<compile_context>
chip_gen: v7x
topology: tpu7x:2x2x1
jax: 0.10.0
libtpu: 0.0.40
codegen_flags: <defaults>
</compile_context>

<pallas_src>
import functools

import jax
import jax.numpy as jnp
import numpy as np
from jax import lax
from jax.experimental import pallas as pl
from jax.experimental.pallas import tpu as pltpu

_LANE = 128
_SUB = 8
_BIG = 1e30


def _round_up(x, m):
    return (x + m - 1) // m * m


def _repmet_loss_kernel(x_ref, tgt_ref, reps_ref, r2_ref,
                        dist_out_ref, class_out_ref, *,
                        M, Mp, k, alpha, inv_two_sigma_sq):
    x = x_ref[...]                      # (TS, Dp), native dtype
    r = reps_ref[...]                   # (Mp, Dp), native dtype (resident)
    r2 = r2_ref[...]                    # (1, Mp) f32, precomputed |rep|^2
    t = tgt_ref[...]                    # (TS, 1) int32; -1 marks padded rows

    TS = x.shape[0]
    big = jnp.float32(_BIG)

    # Squared Euclidean distances via the MXU, with the per-row |x|^2 term
    # deferred until after the row minima (it is constant per row):
    #   d'[i, m] = |r_m|^2 - 2 * x_i . r_m
    xy = lax.dot_general(x, r, (((1,), (1,)), ((), ())),
                         preferred_element_type=jnp.float32)       # (TS, Mp)
    d = r2 - 2.0 * xy                                              # (TS, Mp)

    # Neutralise padded rep columns once (skipped when M is lane-aligned).
    rep_idx = lax.broadcasted_iota(jnp.int32, (TS, Mp), 1)
    if M != Mp:
        d = jnp.where(rep_idx < M, d, big)

    # Correct-class mask (one-hot over classes repeated k times) via an iota
    # range test.  Background (t==0) and padded (t==-1) rows have no correct
    # column, so their min_cor stays at the BIG sentinel.
    is_fg = t >= 1                                                 # (TS, 1)
    lo = (t - 1) * k
    mask_cor = jnp.logical_and(
        is_fg, jnp.logical_and(rep_idx >= lo, rep_idx < lo + k))

    min_cor = jnp.min(jnp.where(mask_cor, d, big), axis=1, keepdims=True)
    min_inc = jnp.min(jnp.where(mask_cor, big, d), axis=1, keepdims=True)

    # Re-apply |x|^2 and the >=0 clamp on the (TS, 1) minima only.
    xf = x.astype(jnp.float32)
    x2 = jnp.sum(xf * xf, axis=1, keepdims=True)                   # (TS, 1)
    min_cor = jnp.maximum(min_cor + x2, 0.0)
    min_inc = jnp.maximum(min_inc + x2, 0.0)

    # Distance (triplet) loss; background / padded rows contribute 0 (same as
    # the reference's `torch.where(target == 0, 0, losses)`).
    losses = jnp.maximum(min_cor - min_inc + alpha, 0.0)
    losses = jnp.where(is_fg, losses, 0.0)

    # Classification (NLL) loss.  exp is monotone, so the max probability of
    # a rep group equals exp(-min_dist_of_group / (2 sigma^2)); only (TS, 1)
    # transcendentals are needed instead of a full (TS, Mp) probs array.
    min_all = jnp.minimum(min_cor, min_inc)                        # min over all reps
    cor_prob = jnp.exp(-min_cor * inv_two_sigma_sq)
    back_p = 1.0 - jnp.exp(-min_all * inv_two_sigma_sq)
    picked = jnp.where(is_fg, cor_prob, back_p)
    nll = -jnp.log(picked)
    nll = jnp.where(t < 0, 0.0, nll)    # padded rows contribute nothing

    dist_sum = jnp.sum(losses, axis=0, keepdims=True)              # (1, 1)
    class_sum = jnp.sum(nll, axis=0, keepdims=True)                # (1, 1)

    # Lane-dense (8, 128) partial-sum blocks (unmasked stores).
    zeros_blk = jnp.zeros((_SUB, _LANE), jnp.float32)
    dist_out_ref[0] = zeros_blk + dist_sum
    class_out_ref[0] = zeros_blk + class_sum


def repmet_loss(x, reps, target, *, N, k, alpha=1.0, sigma=0.5,
                lossclass_weight=0.5, lossdistanc_weight=0.5,
                loss_weight=1.0, block_s=512):
    """Pallas implementation of RepMetLoss.forward(input, target)."""
    S, D = x.shape
    M = N * k
    assert reps.shape == (M, D)

    # Lane-dense padding of the rep axis and embedding dim.
    Dp = _round_up(D, _LANE)
    Mp = _round_up(M, _LANE)
    # S tile: multiple of 8 sublanes; sized so the double-buffered x tile +
    # resident reps + (TS, Mp) temporaries fit well inside v7x's 64 MiB VMEM
    # (and trivially inside v5e/v6e's 128 MiB).
    TS = min(block_s, _round_up(S, _SUB))
    Sp = _round_up(S, TS)
    num_tiles = Sp // TS

    xp = x if (Sp == S and Dp == D) else jnp.pad(
        x, ((0, Sp - S), (0, Dp - D)))
    rp = reps if (Mp == M and Dp == D) else jnp.pad(
        reps, ((0, Mp - M), (0, Dp - D)))
    tgt = target.astype(jnp.int32)
    if Sp != S:
        tgt = jnp.pad(tgt, (0, Sp - S), constant_values=-1)
    tgt2d = tgt.reshape(Sp, 1)

    # Grid-invariant |rep|^2, computed once outside the per-tile loop.
    rf = rp.astype(jnp.float32)
    r2 = jnp.sum(rf * rf, axis=1)[None, :]                         # (1, Mp)

    kernel = functools.partial(
        _repmet_loss_kernel, M=M, Mp=Mp, k=k, alpha=float(alpha),
        inv_two_sigma_sq=float(1.0 / (2.0 * sigma ** 2)))

    # TODO(synk): if N*k can be very large, add an M grid axis with online
    # (flash-style) running minima; for typical RepMet sizes M fits in VMEM.
    dist_part, class_part = pl.pallas_call(
        kernel,
        grid=(num_tiles,),
        in_specs=[
            pl.BlockSpec((TS, Dp), lambda i: (i, 0)),      # x tile (pipelined)
            pl.BlockSpec((TS, 1), lambda i: (i, 0)),       # target tile
            pl.BlockSpec((Mp, Dp), lambda i: (0, 0)),      # reps (resident)
            pl.BlockSpec((1, Mp), lambda i: (0, 0)),       # |rep|^2 (resident)
        ],
        out_specs=[
            pl.BlockSpec((1, _SUB, _LANE), lambda i: (i, 0, 0)),
            pl.BlockSpec((1, _SUB, _LANE), lambda i: (i, 0, 0)),
        ],
        out_shape=[
            jax.ShapeDtypeStruct((num_tiles, _SUB, _LANE), jnp.float32),
            jax.ShapeDtypeStruct((num_tiles, _SUB, _LANE), jnp.float32),
        ],
        compiler_params=pltpu.CompilerParams(
            dimension_semantics=("parallel",),
            vmem_limit_bytes=32 * 1024 * 1024),
    )(xp, tgt2d, rp, r2)

    loss_distanc = lossdistanc_weight * jnp.sum(dist_part[:, 0, 0]) / S
    loss_class = lossclass_weight * jnp.sum(class_part[:, 0, 0]) / S
    return loss_weight * (loss_distanc + loss_class)


def repmet_loss_ref(x, reps, target, *, N, k, alpha=1.0, sigma=0.5,
                    lossclass_weight=0.5, lossdistanc_weight=0.5,
                    loss_weight=1.0):
    """Plain-JAX reference mirroring the PyTorch code (for a sanity check)."""
    S = target.shape[0]
    dist = jnp.sum((x[:, None, :] - reps[None, :, :]) ** 2, axis=2)
    valmax = jnp.max(dist) + 10.0
    mask = (target[:, None] >= 1) & (jnp.arange(N)[None, :] == target[:, None] - 1)
    mask_cor = jnp.repeat(mask, k, axis=1)
    mask_inc = jnp.logical_not(mask_cor)
    cor = dist + valmax * mask_inc.astype(jnp.float32)
    inc = dist + valmax * mask_cor.astype(jnp.float32)
    losses = jax.nn.relu(jnp.min(cor, axis=1) - jnp.min(inc, axis=1) + alpha)
    losses_la = jnp.where(target == 0, 0.0, losses)
    loss_distanc = lossdistanc_weight * jnp.mean(losses_la)
    probs = jnp.exp(-dist / (2.0 * sigma ** 2))
    hard_probs = jnp.max(probs.reshape(S, N, k), axis=2)
    back_p = 1.0 - jnp.max(hard_probs, axis=1)
    probs_back = jnp.concatenate([back_p[:, None], hard_probs], axis=1)
    loss_class = lossclass_weight * (
        -jnp.mean(jnp.log(probs_back)[jnp.arange(S), target]))
    return loss_weight * (loss_distanc + loss_class)


if __name__ == "__main__":
    # Module config (RepMetLoss(N, k, emb_size)) and small shapes.
    N, k, emb_size = 4, 2, 32
    S = 10                     # n_samples (exercises the S-padding path)

    key = jax.random.PRNGKey(0)
    kx, kr, kt = jax.random.split(key, 3)

    # input embeddings (scaled to keep probabilities well away from underflow)
    x = 0.25 * jax.random.normal(kx, (S, emb_size), dtype=jnp.float32)
    # reps parameter: F.normalize(torch.randn(N*k, emb_size)) analogue
    reps = jax.random.normal(kr, (N * k, emb_size), dtype=jnp.float32)
    reps = reps / jnp.linalg.norm(reps, axis=1, keepdims=True)
    # labels in [0, N]; 0 is background
    target = jax.random.randint(kt, (S,), 0, N + 1, dtype=jnp.int32)

    loss = repmet_loss(x, reps, target, N=N, k=k)
    loss = jax.block_until_ready(loss)

    ref = repmet_loss_ref(x, reps, target, N=N, k=k)
    np.testing.assert_allclose(np.asarray(loss), np.asarray(ref),
                               rtol=2e-3, atol=2e-3)
    print("KERNEL_OK")
</pallas_src>

<mosaic_0001>
module attributes {stable_mosaic.version = 11 : i64} {
  func.func @_repmet_loss_kernel(%arg0: i32, %arg1: memref<16x128xf32, #tpu.memory_space<vmem>>, %arg2: memref<16x1xi32, #tpu.memory_space<vmem>>, %arg3: memref<128x128xf32, #tpu.memory_space<vmem>>, %arg4: memref<1x128xf32, #tpu.memory_space<vmem>>, %arg5: memref<1x8x128xf32, #tpu.memory_space<vmem>>, %arg6: memref<1x8x128xf32, #tpu.memory_space<vmem>>) attributes {dimension_semantics = [#tpu.dimension_semantics<parallel>], iteration_bounds = array<i64: 1>, scalar_prefetch = 0 : i64, scratch_operands = 0 : i64, tpu.core_type = #tpu.core_type<tc>, window_params = [{transform_indices = @transform_0, window_bounds = array<i64: 16, 128>}, {transform_indices = @transform_1, window_bounds = array<i64: 16, 1>}, {pipeline_mode = #tpu.pipeline_mode<synchronous>, transform_indices = @transform_2, window_bounds = array<i64: 128, 128>}, {pipeline_mode = #tpu.pipeline_mode<synchronous>, transform_indices = @transform_3, window_bounds = array<i64: 1, 128>}, {transform_indices = @transform_4, window_bounds = array<i64: 1, 8, 128>}, {transform_indices = @transform_5, window_bounds = array<i64: 1, 8, 128>}]} {
    %c0 = arith.constant 0 : index
    %c0_0 = arith.constant 0 : index
    %0 = vector.load %arg1[%c0, %c0_0] : memref<16x128xf32, #tpu.memory_space<vmem>>, vector<16x128xf32>
    %c0_1 = arith.constant 0 : index
    %c0_2 = arith.constant 0 : index
    %1 = vector.load %arg3[%c0_1, %c0_2] : memref<128x128xf32, #tpu.memory_space<vmem>>, vector<128x128xf32>
    %c0_3 = arith.constant 0 : index
    %c0_4 = arith.constant 0 : index
    %2 = vector.load %arg4[%c0_3, %c0_4] : memref<1x128xf32, #tpu.memory_space<vmem>>, vector<1x128xf32>
    %c0_5 = arith.constant 0 : index
    %c0_6 = arith.constant 0 : index
    %3 = vector.load %arg2[%c0_5, %c0_6] : memref<16x1xi32, #tpu.memory_space<vmem>>, vector<16x1xi32>
    %cst = arith.constant dense<0.000000e+00> : vector<16x128xf32>
    %4 = tpu.matmul %0, %1, %cst {dimension_numbers = #tpu.dot_dimension_numbers<[1], [1], [0], [0], [0, 0, 1, 0], [], []>} : vector<16x128xf32>, vector<128x128xf32>, vector<16x128xf32> -> vector<16x128xf32>
    %cst_7 = arith.constant 2.000000e+00 : f32
    %5 = vector.broadcast %cst_7 : f32 to vector<16x128xf32>
    %6 = arith.mulf %5, %4 : vector<16x128xf32>
    %7 = vector.broadcast %2 : vector<1x128xf32> to vector<16x128xf32>
    %8 = arith.subf %7, %6 : vector<16x128xf32>
    %9 = tpu.iota {dimensions = array<i32: 1>} : vector<16x128xi32>
    %c8_i32 = arith.constant 8 : i32
    %10 = vector.broadcast %c8_i32 : i32 to vector<16x128xi32>
    %11 = arith.cmpi slt, %9, %10 : vector<16x128xi32>
    %cst_8 = arith.constant 1.000000e+30 : f32
    %12 = vector.broadcast %cst_8 : f32 to vector<16x128xf32>
    %13 = arith.select %11, %8, %12 : vector<16x128xi1>, vector<16x128xf32>
    %c1_i32 = arith.constant 1 : i32
    %14 = vector.broadcast %c1_i32 : i32 to vector<16x1xi32>
    %15 = arith.cmpi sge, %3, %14 : vector<16x1xi32>
    %c1_i32_9 = arith.constant 1 : i32
    %16 = vector.broadcast %c1_i32_9 : i32 to vector<16x1xi32>
    %17 = arith.subi %3, %16 : vector<16x1xi32>
    %c2_i32 = arith.constant 2 : i32
    %18 = vector.broadcast %c2_i32 : i32 to vector<16x1xi32>
    %19 = arith.muli %17, %18 : vector<16x1xi32>
    %20 = vector.broadcast %19 : vector<16x1xi32> to vector<16x128xi32>
    %21 = arith.cmpi sge, %9, %20 : vector<16x128xi32>
    %c2_i32_10 = arith.constant 2 : i32
    %22 = vector.broadcast %c2_i32_10 : i32 to vector<16x1xi32>
    %23 = arith.addi %19, %22 : vector<16x1xi32>
    %24 = vector.broadcast %23 : vector<16x1xi32> to vector<16x128xi32>
    %25 = arith.cmpi slt, %9, %24 : vector<16x128xi32>
    %26 = arith.andi %21, %25 : vector<16x128xi1>
    %27 = vector.broadcast %15 : vector<16x1xi1> to vector<16x128xi1>
    %28 = arith.andi %27, %26 : vector<16x128xi1>
    %cst_11 = arith.constant 1.000000e+30 : f32
    %29 = vector.broadcast %cst_11 : f32 to vector<16x128xf32>
    %30 = arith.select %28, %13, %29 : vector<16x128xi1>, vector<16x128xf32>
    %cst_12 = arith.constant dense<0x7F800000> : vector<16xf32>
    %31 = vector.multi_reduction <minimumf>, %30, %cst_12 [1] : vector<16x128xf32> to vector<16xf32>
    %32 = vector.shape_cast %31 : vector<16xf32> to vector<16x1xf32>
    %cst_13 = arith.constant 1.000000e+30 : f32
    %33 = vector.broadcast %cst_13 : f32 to vector<16x128xf32>
    %34 = arith.select %28, %33, %13 : vector<16x128xi1>, vector<16x128xf32>
    %cst_14 = arith.constant dense<0x7F800000> : vector<16xf32>
    %35 = vector.multi_reduction <minimumf>, %34, %cst_14 [1] : vector<16x128xf32> to vector<16xf32>
    %36 = vector.shape_cast %35 : vector<16xf32> to vector<16x1xf32>
    %37 = arith.mulf %0, %0 : vector<16x128xf32>
    %cst_15 = arith.constant dense<0.000000e+00> : vector<16xf32>
    %38 = vector.multi_reduction <add>, %37, %cst_15 [1] : vector<16x128xf32> to vector<16xf32>
    %39 = vector.shape_cast %38 : vector<16xf32> to vector<16x1xf32>
    %40 = arith.addf %32, %39 : vector<16x1xf32>
    %cst_16 = arith.constant 0.000000e+00 : f32
    %41 = vector.broadcast %cst_16 : f32 to vector<16x1xf32>
    %42 = arith.maximumf %40, %41 : vector<16x1xf32>
    %43 = arith.addf %36, %39 : vector<16x1xf32>
    %cst_17 = arith.constant 0.000000e+00 : f32
    %44 = vector.broadcast %cst_17 : f32 to vector<16x1xf32>
    %45 = arith.maximumf %43, %44 : vector<16x1xf32>
    %46 = arith.subf %42, %45 : vector<16x1xf32>
    %cst_18 = arith.constant 1.000000e+00 : f32
    %47 = vector.broadcast %cst_18 : f32 to vector<16x1xf32>
    %48 = arith.addf %46, %47 : vector<16x1xf32>
    %cst_19 = arith.constant 0.000000e+00 : f32
    %49 = vector.broadcast %cst_19 : f32 to vector<16x1xf32>
    %50 = arith.maximumf %48, %49 : vector<16x1xf32>
    %cst_20 = arith.constant 0.000000e+00 : f32
    %51 = vector.broadcast %cst_20 : f32 to vector<16x1xf32>
    %52 = arith.select %15, %50, %51 : vector<16x1xi1>, vector<16x1xf32>
    %53 = arith.minimumf %42, %45 : vector<16x1xf32>
    %cst_21 = arith.constant 0.000000e+00 : f32
    %54 = vector.broadcast %cst_21 : f32 to vector<16x1xf32>
    %55 = arith.subf %54, %42 : vector<16x1xf32>
    %cst_22 = arith.constant 2.000000e+00 : f32
    %56 = vector.broadcast %cst_22 : f32 to vector<16x1xf32>
    %57 = arith.mulf %55, %56 : vector<16x1xf32>
    %58 = math.exp %57 : vector<16x1xf32>
    %cst_23 = arith.constant 0.000000e+00 : f32
    %59 = vector.broadcast %cst_23 : f32 to vector<16x1xf32>
    %60 = arith.subf %59, %53 : vector<16x1xf32>
    %cst_24 = arith.constant 2.000000e+00 : f32
    %61 = vector.broadcast %cst_24 : f32 to vector<16x1xf32>
    %62 = arith.mulf %60, %61 : vector<16x1xf32>
    %63 = math.exp %62 : vector<16x1xf32>
    %cst_25 = arith.constant 1.000000e+00 : f32
    %64 = vector.broadcast %cst_25 : f32 to vector<16x1xf32>
    %65 = arith.subf %64, %63 : vector<16x1xf32>
    %66 = arith.select %15, %58, %65 : vector<16x1xi1>, vector<16x1xf32>
    %67 = math.log %66 : vector<16x1xf32>
    %cst_26 = arith.constant 0.000000e+00 : f32
    %68 = vector.broadcast %cst_26 : f32 to vector<16x1xf32>
    %69 = arith.subf %68, %67 : vector<16x1xf32>
    %c0_i32 = arith.constant 0 : i32
    %70 = vector.broadcast %c0_i32 : i32 to vector<16x1xi32>
    %71 = arith.cmpi slt, %3, %70 : vector<16x1xi32>
    %cst_27 = arith.constant 0.000000e+00 : f32
    %72 = vector.broadcast %cst_27 : f32 to vector<16x1xf32>
    %73 = arith.select %71, %72, %69 : vector<16x1xi1>, vector<16x1xf32>
    %cst_28 = arith.constant dense<0.000000e+00> : vector<1xf32>
    %74 = vector.multi_reduction <add>, %52, %cst_28 [0] : vector<16x1xf32> to vector<1xf32>
    %75 = vector.shape_cast %74 : vector<1xf32> to vector<1x1xf32>
    %cst_29 = arith.constant dense<0.000000e+00> : vector<1xf32>
    %76 = vector.multi_reduction <add>, %73, %cst_29 [0] : vector<16x1xf32> to vector<1xf32>
    %77 = vector.shape_cast %76 : vector<1xf32> to vector<1x1xf32>
    %cst_30 = arith.constant 0.000000e+00 : f32
    %78 = vector.broadcast %cst_30 : f32 to vector<8x128xf32>
    %79 = vector.broadcast %75 : vector<1x1xf32> to vector<8x128xf32>
    %80 = arith.addf %78, %79 : vector<8x128xf32>
    %c0_31 = arith.constant 0 : index
    %c0_32 = arith.constant 0 : index
    %c0_33 = arith.constant 0 : index
    %81 = vector.load %arg5[%c0_31, %c0_32, %c0_33] : memref<1x8x128xf32, #tpu.memory_space<vmem>>, vector<1x8x128xf32>
    %82 = vector.shape_cast %81 : vector<1x8x128xf32> to vector<8x128xf32>
    %83 = vector.shape_cast %80 : vector<8x128xf32> to vector<1x8x128xf32>
    tpu.vector_store %arg5[%c0_31, %c0_32, %c0_33], %83 {strides = array<i32>} : memref<1x8x128xf32, #tpu.memory_space<vmem>>, vector<1x8x128xf32>,
    %84 = vector.broadcast %77 : vector<1x1xf32> to vector<8x128xf32>
    %85 = arith.addf %78, %84 : vector<8x128xf32>
    %c0_34 = arith.constant 0 : index
    %c0_35 = arith.constant 0 : index
    %c0_36 = arith.constant 0 : index
    %86 = vector.load %arg6[%c0_34, %c0_35, %c0_36] : memref<1x8x128xf32, #tpu.memory_space<vmem>>, vector<1x8x128xf32>
    %87 = vector.shape_cast %86 : vector<1x8x128xf32> to vector<8x128xf32>
    %88 = vector.shape_cast %85 : vector<8x128xf32> to vector<1x8x128xf32>
    tpu.vector_store %arg6[%c0_34, %c0_35, %c0_36], %88 {strides = array<i32>} : memref<1x8x128xf32, #tpu.memory_space<vmem>>, vector<1x8x128xf32>,
    return
  }
  func.func @transform_0(%arg0: i32) -> (i32, i32) {
    %c0_i32 = arith.constant 0 : i32
    %c0_i32_0 = arith.constant 0 : i32
    return %arg0, %c0_i32 : i32, i32
  }
  func.func @transform_1(%arg0: i32) -> (i32, i32) {
    %c0_i32 = arith.constant 0 : i32
    %c0_i32_0 = arith.constant 0 : i32
    return %arg0, %c0_i32 : i32, i32
  }
  func.func @transform_2(%arg0: i32) -> (i32, i32) {
    %c0_i32 = arith.constant 0 : i32
    %c0_i32_0 = arith.constant 0 : i32
    %c0_i32_1 = arith.constant 0 : i32
    return %c0_i32, %c0_i32_0 : i32, i32
  }
  func.func @transform_3(%arg0: i32) -> (i32, i32) {
    %c0_i32 = arith.constant 0 : i32
    %c0_i32_0 = arith.constant 0 : i32
    %c0_i32_1 = arith.constant 0 : i32
    return %c0_i32, %c0_i32_0 : i32, i32
  }
  func.func @transform_4(%arg0: i32) -> (i32, i32, i32) {
    %c0_i32 = arith.constant 0 : i32
    %c0_i32_0 = arith.constant 0 : i32
    %c0_i32_1 = arith.constant 0 : i32
    return %arg0, %c0_i32, %c0_i32_0 : i32, i32, i32
  }
  func.func @transform_5(%arg0: i32) -> (i32, i32, i32) {
    %c0_i32 = arith.constant 0 : i32
    %c0_i32_0 = arith.constant 0 : i32
    %c0_i32_1 = arith.constant 0 : i32
    return %arg0, %c0_i32, %c0_i32_0 : i32, i32, i32
  }
}

</mosaic_0001>

<llo_original>
// kernel: tpu_custom_call.1
$region0: #{tpu_custom_call.1}
  #allocation0 [shape = 'u32[]', space=smem, size = 0x4, offset = 0x4, fixed_abs, tag = 'smem constant byte address 0x4 - core index']
  #allocation1 [shape = 'u32[144,128]{1,0:T(1,128)}', space=vmem, size = 0x12000, scoped, tag = 'internal scratch']
  %s0 = inlined_call_operand.vmem [shape: f32[16,128], index: 0, kind: input, shape index: {}]
  %s1 = inlined_call_operand.vmem [shape: s32[16,1], index: 1, kind: input, shape index: {}]
  %s2 = inlined_call_operand.hbm [shape: f32[128,128], index: 2, kind: input, shape index: {}]
  %s3 = inlined_call_operand.vmem [shape: f32[1,128], index: 3, kind: input, shape index: {}]
  %s4 = inlined_call_operand.hbm [shape: f32[1,8,128], index: 4, kind: output, shape index: {0}]
  %s5 = inlined_call_operand.hbm [shape: f32[1,8,128], index: 5, kind: output, shape index: {1}]
  %6 = xla_tuple %s4, %s5
  %s7 = sld [smem:[#allocation0]]
  $region38: #{tpu_custom_call.1} parent=0
    _
  %s9 = ssub.s32 1, %s7
  %s10 = scalar_select 0, %s9, %s7
  $region1: #{tpu_custom_call.1} parent=0
    #allocation2 [shape = 'u8[65536]{0}', space=vmem, size = 0x10000, scoped, tag = 'input window, operand 2, single buffered']
    #allocation3 [shape = 's32[1]{0}', space=sflag, size = 0x4, scoped, tag = 'scoped memory for tpu_custom_call.1']
    #allocation4 [shape = 's32[1]{0}', space=sflag, size = 0x4, scoped, tag = 'scoped memory for tpu_custom_call.1']
    #allocation5 [shape = 'u8[4096]{0}', space=vmem, size = 0x1000, scoped, tag = 'output window, operand 0, single buffered']
    #allocation6 [shape = 'u8[4096]{0}', space=vmem, size = 0x1000, scoped, tag = 'output window, operand 1, single buffered']
    #allocation7 [shape = 's32[1]{0}', space=sflag, size = 0x4, scoped, tag = 'scoped memory for tpu_custom_call.1']
    %11 = vsyncpa [#allocation3], 0
    %12 = vsyncpa [#allocation4], 0
    %13 = vsyncpa [#allocation7], 0
    // Predicated region
    $region2: #{tpu_custom_call.1} parent=1 // pred_check
      _
    $region3: #{tpu_custom_call.1} parent=1 // pred_check_branch
      %15 = sbr.rel (0) target = $region5
    $region4: #{tpu_custom_call.1} parent=1 // pred_region
      _
    $region5: #{tpu_custom_call.1} parent=1 // pred_fallthru
      _
    // Predicated region
    $region6: #{tpu_custom_call.1} parent=1 // pred_check
      _
    $region7: #{tpu_custom_call.1} parent=1 // pred_check_branch
      %17 = sbr.rel (0) target = $region9
    $region8: #{tpu_custom_call.1} parent=1 // pred_region
      _
    $region9: #{tpu_custom_call.1} parent=1 // pred_fallthru
      _
    // Predicated region
    $region10: #{tpu_custom_call.1} parent=1 // pred_check
      _
    $region11: #{tpu_custom_call.1} parent=1 // pred_check_branch
      %19 = sbr.rel (0) target = $region13
    $region12: #{tpu_custom_call.1} parent=1 // pred_region
      %s21 = ssub.s32 2048, 2048
      %22 = vsyncadd [#allocation3], %s21
      %s23 = sshll.u32 [#allocation2], 4
      %s24 = int_to_ptr.vmem [resolvable:$true] %s23
      %29 = dma.hbm_to_vmem [thread:$0]  %s2, 2048, %s24, [#allocation3], 128, 128, 8
    $region13: #{tpu_custom_call.1} parent=1 // pred_fallthru
      _
    // Predicated region
    $region14: #{tpu_custom_call.1} parent=1 // pred_check
      _
    $region15: #{tpu_custom_call.1} parent=1 // pred_check_branch
      %31 = sbr.rel (0) target = $region17
    $region16: #{tpu_custom_call.1} parent=1 // pred_region
      _
    $region17: #{tpu_custom_call.1} parent=1 // pred_fallthru
      _
    // Predicated region
    $region18: #{tpu_custom_call.1} parent=1 // pred_check
      _
    $region19: #{tpu_custom_call.1} parent=1 // pred_check_branch
      %33 = sbr.rel (0) target = $region21
    $region20: #{tpu_custom_call.1} parent=1 // pred_region
      %34 = dma.done [#allocation3], 2048
    $region21: #{tpu_custom_call.1} parent=1 // pred_fallthru
      _
    %v35 = vld [vmem:[%s0] sm:$0xff]
    %v36 = vld [vmem:[%s0 + $0x8] sm:$0xff]
    %v37 = vld [vmem:[#allocation2] sm:$0xff]
    %v38 = vld [vmem:[#allocation2 + $0x8] sm:$0xff]
    %v39 = vld [vmem:[#allocation2 + $0x10] sm:$0xff]
    %v40 = vld [vmem:[#allocation2 + $0x18] sm:$0xff]
    %v41 = vld [vmem:[#allocation2 + $0x20] sm:$0xff]
    %v42 = vld [vmem:[#allocation2 + $0x28] sm:$0xff]
    %v43 = vld [vmem:[#allocation2 + $0x30] sm:$0xff]
    %v44 = vld [vmem:[#allocation2 + $0x38] sm:$0xff]
    %v45 = vld [vmem:[#allocation2 + $0x40] sm:$0xff]
    %v46 = vld [vmem:[#allocation2 + $0x48] sm:$0xff]
    %v47 = vld [vmem:[#allocation2 + $0x50] sm:$0xff]
    %v48 = vld [vmem:[#allocation2 + $0x58] sm:$0xff]
    %v49 = vld [vmem:[#allocation2 + $0x60] sm:$0xff]
    %v50 = vld [vmem:[#allocation2 + $0x68] sm:$0xff]
    %v51 = vld [vmem:[#allocation2 + $0x70] sm:$0xff]
    %v52 = vld [vmem:[#allocation2 + $0x78] sm:$0xff]
    %v53 = vld [vmem:[%s3] sm:$0x1]
    %v54 = vld [vmem:[%s1] sm:$0xff]
    %v55 = vld [vmem:[%s1 + $0x8] sm:$0xff]
    %56 = vmatprep.subr.mxu0 0.0
    %57 = vmatpush1.xpose.msra.mxu0 %v37
    %58 = vmatprep.subr.mxu0 0.0
    %59 = vmatpush1.xpose.msra.mxu0 %v38
    %60 = vmatprep.subr.mxu0 0.0
    %61 = vmatpush1.xpose.msra.mxu0 %v39
    %62 = vmatprep.subr.mxu0 0.0
    %63 = vmatpush1.xpose.msra.mxu0 %v40
    %64 = vmatprep.subr.mxu0 0.0
    %65 = vmatpush1.xpose.msra.mxu0 %v41
    %66 = vmatprep.subr.mxu0 0.0
    %67 = vmatpush1.xpose.msra.mxu0 %v42
    %68 = vmatprep.subr.mxu0 0.0
    %69 = vmatpush1.xpose.msra.mxu0 %v43
    %70 = vmatprep.subr.mxu0 0.0
    %71 = vmatpush1.xpose.msra.mxu0 %v44
    %72 = vmatprep.subr.mxu0 0.0
    %73 = vmatpush1.xpose.msra.mxu0 %v45
    %74 = vmatprep.subr.mxu0 0.0
    %75 = vmatpush1.xpose.msra.mxu0 %v46
    %76 = vmatprep.subr.mxu0 0.0
    %77 = vmatpush1.xpose.msra.mxu0 %v47
    %78 = vmatprep.subr.mxu0 0.0
    %79 = vmatpush1.xpose.msra.mxu0 %v48
    %80 = vmatprep.subr.mxu0 0.0
    %81 = vmatpush1.xpose.msra.mxu0 %v49
    %82 = vmatprep.subr.mxu0 0.0
    %83 = vmatpush1.xpose.msra.mxu0 %v50
    %84 = vmatprep.subr.mxu0 0.0
    %85 = vmatpush1.xpose.msra.mxu0 %v51
    %86 = vmatprep.subr.mxu0 0.0
    %87 = vmatpush1.xpose.msra.mxu0 %v52
    %88 = vmatprep.subr.mxu0 0.0
    %89 = vmatpush1.xpose.msra.mxu0 0.0
    %90 = vmatprep.subr.mxu0 0.0
    %91 = vmatpush1.xpose.msra.mxu0 0.0
    %92 = vmatprep.subr.mxu0 0.0
    %93 = vmatpush1.xpose.msra.mxu0 0.0
    %94 = vmatprep.subr.mxu0 0.0
    %95 = vmatpush1.xpose.msra.mxu0 0.0
    %96 = vmatprep.subr.mxu0 0.0
    %97 = vmatpush1.xpose.msra.mxu0 0.0
    %98 = vmatprep.subr.mxu0 0.0
    %99 = vmatpush1.xpose.msra.mxu0 0.0
    %100 = vmatprep.subr.mxu0 0.0
    %101 = vmatpush1.xpose.msra.mxu0 0.0
    %102 = vmatprep.subr.mxu0 0.0
    %103 = vmatpush1.xpose.msra.mxu0 0.0
    %104 = vmatprep.subr.mxu0 0.0
    %105 = vmatpush1.xpose.msra.mxu0 0.0
    %106 = vmatprep.subr.mxu0 0.0
    %107 = vmatpush1.xpose.msra.mxu0 0.0
    %108 = vmatprep.subr.mxu0 0.0
    %109 = vmatpush1.xpose.msra.mxu0 0.0
    %110 = vmatprep.subr.mxu0 0.0
    %111 = vmatpush1.xpose.msra.mxu0 0.0
    %112 = vmatprep.subr.mxu0 0.0
    %113 = vmatpush1.xpose.msra.mxu0 0.0
    %114 = vmatprep.subr.mxu0 0.0
    %115 = vmatpush1.xpose.msra.mxu0 0.0
    %116 = vmatprep.subr.mxu0 0.0
    %117 = vmatpush1.xpose.msra.mxu0 0.0
    %118 = vmatprep.subr.mxu0 0.0
    %119 = vmatpush1.xpose.msra.mxu0 0.0
    %120 = vmatprep.mubr.f32.mxu0 0.0
    %121 = vmatmul.mubr.f32.gmra.mrb[0].mxu0 %v35
    %v122 = vpop.f32.mrb[0].mxu0
    %v123 = vadd.f32 0.0, %v122
    %v124 = vpop.f32.mrb[0].mxu0
    %125 = vmatprep.mubr.f32.mxu0 0.0
    %126 = vmatmul.mubr.f32.gmra.mrb[0].mxu0 %v36
    %v127 = vpop.f32.mrb[0].mxu0
    %v128 = vadd.f32 0.0, %v127
    %v129 = vpop.f32.mrb[0].mxu0
    %130 = vdwg.mxu0
    %v131 = vmul.f32 %v123, 2.0
    %v132 = vmul.f32 %v128, 2.0
    %v134 = vlaneseq
    %v135 = vshrl.u32 %v134, 7
    %v136 = vsub.s32 0, %v135
    %v137 = vrot.slane %v53, %v136
    %v139 = vsub.f32 %v137, %v131
    %v140 = vsub.f32 %v137, %v132
    %v141 = vlaneseq
    %v142 = vand.u32 %v141, 127
    %vm143 = vcmp.lt.s32.totalorder %v142, 8
    %v144 = vsel %vm143, %v139, 1e+30
    %v145 = vsel %vm143, %v140, 1e+30
    %vm146 = vcmp.ge.s32.totalorder %v54, 1
    %vm147 = vcmp.ge.s32.totalorder %v55, 1
    %v148 = vsub.s32 %v54, 1
    %v149 = vsub.s32 %v55, 1
    %v150 = vmul.u32 %v148, 2
    %v151 = vmul.u32 %v149, 2
    %152 = vset.pattern.permute.xlu0 0
    %153 = vperm.xlu0 %152, %v150
    %v154 = vpop.permute.xlu0 %153
    %155 = vset.pattern.permute.xlu0 0
    %156 = vperm.xlu0 %155, %v151
    %v157 = vpop.permute.xlu0 %156
    %vm158 = vcmp.ge.s32.totalorder %v142, %v154
    %vm159 = vcmp.ge.s32.totalorder %v142, %v157
    %v160 = vadd.s32 %v150, 2
    %v161 = vadd.s32 %v151, 2
    %162 = vset.pattern.permute.xlu0 0
    %163 = vperm.xlu0 %162, %v160
    %v164 = vpop.permute.xlu0 %163
    %165 = vset.pattern.permute.xlu0 0
    %166 = vperm.xlu0 %165, %v161
    %v167 = vpop.permute.xlu0 %166
    %vm168 = vcmp.lt.s32.totalorder %v142, %v164
    %vm169 = vcmp.lt.s32.totalorder %v142, %v167
    %vm170 = vmand %vm158, %vm168
    %vm171 = vmand %vm159, %vm169
    %v172 = vsel %vm146, 1, 0
    %v173 = vsel %vm147, 1, 0
    %174 = vset.pattern.permute.xlu0 0
    %175 = vperm.xlu0 %174, %v172
    %v176 = vpop.permute.xlu0 %175
    %177 = vset.pattern.permute.xlu0 0
    %178 = vperm.xlu0 %177, %v173
    %v179 = vpop.permute.xlu0 %178
    %vm180 = vcmp.eq.s32.totalorder %v176, 1
    %vm181 = vcmp.eq.s32.totalorder %v179, 1
    %vm182 = vmand %vm180, %vm170
    %vm183 = vmand %vm181, %vm171
    %v184 = vsel %vm182, %v144, 1e+30
    %v185 = vsel %vm183, %v145, 1e+30
    %186 = vmin.xlane.f32.xlu0 %v184
    %v187 = vpop.xlane.xlu0 %186
    %188 = vmin.xlane.f32.xlu0 %v185
    %v189 = vpop.xlane.xlu0 %188
    %v190 = vsel %vm182, 1e+30, %v144
    %v191 = vsel %vm183, 1e+30, %v145
    %192 = vmin.xlane.f32.xlu0 %v190
    %v193 = vpop.xlane.xlu0 %192
    %194 = vmin.xlane.f32.xlu0 %v191
    %v195 = vpop.xlane.xlu0 %194
    %v196 = vmul.f32 %v35, %v35
    %v197 = vmul.f32 %v36, %v36
    %198 = vadd.xlane.f32.xlu0 %v196
    %v199 = vpop.xlane.xlu0 %198
    %200 = vadd.xlane.f32.xlu0 %v197
    %v201 = vpop.xlane.xlu0 %200
    %v202 = vadd.f32 %v187, %v199
    %v203 = vadd.f32 %v189, %v201
    %v204 = vmax.f32 %v202, 0.0
    %v205 = vmax.f32 %v203, 0.0
    %v206 = vadd.f32 %v193, %v199
    %v207 = vadd.f32 %v195, %v201
    %v208 = vmax.f32 %v206, 0.0
    %v209 = vmax.f32 %v207, 0.0
    %v210 = vsub.f32 %v204, %v208
    %v211 = vsub.f32 %v205, %v209
    %v212 = vadd.f32 %v210, 1.0
    %v213 = vadd.f32 %v211, 1.0
    %v214 = vmax.f32 %v212, 0.0
    %v215 = vmax.f32 %v213, 0.0
    %v216 = vsel %vm146, %v214, 0.0
    %v217 = vsel %vm147, %v215, 0.0
    %v218 = vmin.f32 %v204, %v208
    %v219 = vmin.f32 %v205, %v209
    %v220 = vsub.f32 0.0, %v204
    %v221 = vsub.f32 0.0, %v205
    %v222 = vmul.f32 %v220, 2.0
    %v223 = vmul.f32 %v221, 2.0
    %v224 = vmul.f32 %v222, 1.442695
    %v225 = vpow.pop %v224
    %v226 = vmul.f32 %v223, 1.442695
    %v227 = vpow.pop %v226
    %v228 = vsub.f32 0.0, %v218
    %v229 = vsub.f32 0.0, %v219
    %v230 = vmul.f32 %v228, 2.0
    %v231 = vmul.f32 %v229, 2.0
    %v232 = vmul.f32 %v230, 1.442695
    %v233 = vpow.pop %v232
    %v234 = vmul.f32 %v231, 1.442695
    %v235 = vpow.pop %v234
    %v236 = vsub.f32 1.0, %v233
    %v237 = vsub.f32 1.0, %v235
    %v238 = vsel %vm146, %v225, %v236
    %v239 = vsel %vm147, %v227, %v237
    %v240 = vlog2.pop %v238
    %v241 = vmul.f32 %v240, 0.6931472
    %v242 = vlog2.pop %v239
    %v243 = vmul.f32 %v242, 0.6931472
    %v244 = vsub.f32 0.0, %v241
    %v245 = vsub.f32 0.0, %v243
    %vm246 = vcmp.lt.s32.totalorder %v54, 0
    %vm247 = vcmp.lt.s32.totalorder %v55, 0
    %v248 = vsel %vm246, 0.0, %v244
    %v249 = vsel %vm247, 0.0, %v245
    %vm250 = vcmask 7168
    %v251 = vsel %vm250, %v216, 0.0
    %v252 = vsel %vm250, %v217, 0.0
    %v253 = vadd.f32 %v251, %v252
    %v254 = vrot.slane %v253, 4
    %v255 = vadd.f32 %v253, %v254
    %v256 = vrot.slane %v255, 2
    %v257 = vadd.f32 %v255, %v256
    %v258 = vrot.slane %v257, 1
    %v259 = vadd.f32 %v257, %v258
    %v260 = vsel %vm250, %v248, 0.0
    %v261 = vsel %vm250, %v249, 0.0
    %v262 = vadd.f32 %v260, %v261
    %v263 = vrot.slane %v262, 4
    %v264 = vadd.f32 %v262, %v263
    %v265 = vrot.slane %v264, 2
    %v266 = vadd.f32 %v264, %v265
    %v267 = vrot.slane %v266, 1
    %v268 = vadd.f32 %v266, %v267
    %270 = vset.pattern.permute.xlu0 0
    %271 = vperm.xlu0 %270, %v259
    %v272 = vpop.permute.xlu0 %271
    %v274 = vadd.f32 %v272, 0.0
    %275 = vst [vmem:[#allocation5] sm:$0xff] %v274
    %277 = vset.pattern.permute.xlu0 0
    %278 = vperm.xlu0 %277, %v268
    %v279 = vpop.permute.xlu0 %278
    %v281 = vadd.f32 %v279, 0.0
    %282 = vst [vmem:[#allocation6] sm:$0xff] %v281
    // Predicated region
    $region22: #{tpu_custom_call.1} parent=1 // pred_check
      _
    $region23: #{tpu_custom_call.1} parent=1 // pred_check_branch
      %284 = sbr.rel (0) target = $region25
    $region24: #{tpu_custom_call.1} parent=1 // pred_region
      %s286 = ssub.s32 128, 128
      %287 = vsyncadd [#allocation4], %s286
      %s289 = sshll.u32 [#allocation5], 4
      %s290 = int_to_ptr.vmem [resolvable:$true] %s289
      %292 = dma.vmem_to_hbm [thread:$0]  %s290, 128, %s4, [#allocation4]
    $region25: #{tpu_custom_call.1} parent=1 // pred_fallthru
      _
    // Predicated region
    $region26: #{tpu_custom_call.1} parent=1 // pred_check
      _
    $region27: #{tpu_custom_call.1} parent=1 // pred_check_branch
      %294 = sbr.rel (0) target = $region29
    $region28: #{tpu_custom_call.1} parent=1 // pred_region
      %s296 = ssub.s32 128, 128
      %297 = vsyncadd [#allocation7], %s296
      %s299 = sshll.u32 [#allocation6], 4
      %s300 = int_to_ptr.vmem [resolvable:$true] %s299
      %302 = dma.vmem_to_hbm [thread:$0]  %s300, 128, %s5, [#allocation7]
    $region29: #{tpu_custom_call.1} parent=1 // pred_fallthru
      _
    // Predicated region
    $region30: #{tpu_custom_call.1} parent=1 // pred_check
      _
    $region31: #{tpu_custom_call.1} parent=1 // pred_check_branch
      %304 = sbr.rel (0) target = $region33
    $region32: #{tpu_custom_call.1} parent=1 // pred_region
      %305 = dma.done [#allocation4], 128
    $region33: #{tpu_custom_call.1} parent=1 // pred_fallthru
      _
    // Predicated region
    $region34: #{tpu_custom_call.1} parent=1 // pred_check
      _
    $region35: #{tpu_custom_call.1} parent=1 // pred_check_branch
      %307 = sbr.rel (0) target = $region37
    $region36: #{tpu_custom_call.1} parent=1 // pred_region
      %308 = dma.done [#allocation7], 128
    $region37: #{tpu_custom_call.1} parent=1 // pred_fallthru
      _
    %309 = vsyncpa [#allocation3], 1
    %310 = vsyncpa [#allocation4], 1
    %311 = vsyncpa [#allocation7], 1

</llo_original>
